<compile_context>
chip_gen: v6e
topology: v6e:2x2x1
jax: 0.10.0
libtpu: 0.0.40
codegen_flags: <defaults>
</compile_context>

<pallas_src>
import functools

import jax
import jax.numpy as jnp
from jax.experimental import pallas as pl
from jax.experimental.pallas import tpu as pltpu

EPS = 1e-12
_MIB = 1024 * 1024


# ---------------------------------------------------------------------------
# Stage 1: power iteration (power_iterations = 1), tiled over the Wd axis.
#
# Per grid step k (rows [k*tkw, (k+1)*tkw) of W^T):
#   v_raw chunk = (W^T u) chunk             -> written to the v_raw output
#   vsq        += ||v_raw chunk||^2
#   wv_acc     += sum_wd v_raw[wd] * W^T[wd, :]   ( == partial W @ v_raw )
# Last step:
#   inv_nv    = 1/(||v_raw||+EPS)    (v = v_raw * inv_nv)
#   wv        = wv_acc * inv_nv      ( == W @ v )
#   u_new     = wv / (||wv||+EPS)
#   sigma     = u_new . wv
#   inv_scale = 1/(0.5*sigma)
#
# The matvecs are HBM-bandwidth bound, so they are done as broadcast-multiply +
# axis reductions (VPU/XLU) in f32 -- no MXU, no large in-kernel transposes.
# ---------------------------------------------------------------------------
def _power_iter_kernel(wt_ref, u_ref,
                       u_out_ref, v_raw_ref, inv_nv_ref, inv_scale_ref,
                       wv_ref, vsq_ref):
    k = pl.program_id(0)

    @pl.when(k == 0)
    def _():
        wv_ref[...] = jnp.zeros_like(wv_ref)
        vsq_ref[...] = jnp.zeros_like(vsq_ref)

    wt = wt_ref[...].astype(jnp.float32)                        # (tkw, Hp)
    u = u_ref[...]                                              # (1, Hp) f32

    v_col = jnp.sum(wt * u, axis=1, keepdims=True)              # (tkw, 1): (W^T u) chunk
    v_raw_ref[...] = v_col
    vsq_ref[...] += jnp.sum(v_col * v_col, keepdims=True)       # (1, 1)
    wv_ref[...] += jnp.sum(wt * v_col, axis=0, keepdims=True)   # (1, Hp): partial W v_raw

    @pl.when(k == pl.num_programs(0) - 1)
    def _():
        inv_nv = 1.0 / (jnp.sqrt(vsq_ref[...]) + EPS)           # (1, 1)
        wv = wv_ref[...] * inv_nv                               # (1, Hp) == W v
        wv_sq = jnp.sum(wv * wv, keepdims=True)                 # (1, 1)
        inv_nwv = 1.0 / (jnp.sqrt(wv_sq) + EPS)
        u_out_ref[...] = wv * inv_nwv                           # u_new = l2norm(W v)
        sigma = wv_sq * inv_nwv                                 # u_new . (W v)
        inv_nv_ref[...] = inv_nv
        inv_scale_ref[...] = 1.0 / (0.5 * sigma)


# ---------------------------------------------------------------------------
# Stage 2: tiled Linear with the spectral scale folded into the output
#          y = (x @ W^T) * inv_scale + b
# Partial sums accumulate directly in the resident f32 output block.
# ---------------------------------------------------------------------------
def _sn_linear_kernel(inv_ref, x_ref, wt_ref, b_ref, y_ref):
    k = pl.program_id(2)
    part = jnp.dot(x_ref[...], wt_ref[...], preferred_element_type=jnp.float32)

    @pl.when(k == 0)
    def _():
        y_ref[...] = part

    @pl.when(k > 0)
    def _():
        y_ref[...] += part

    @pl.when(k == pl.num_programs(2) - 1)
    def _():
        y_ref[...] = y_ref[...] * inv_ref[0, 0] + b_ref[...]


# ---------------------------------------------------------------------------
# Tiling helpers
# ---------------------------------------------------------------------------
def _round_up(x, m):
    return (x + m - 1) // m * m


def _choose_tile(dim, cap, align):
    """(tile, padded_dim): tile % align == 0, tile | padded_dim, minimal padding
    (<=12.5% extra padding tolerated in exchange for a larger tile)."""
    dpad = _round_up(dim, align)
    if dpad <= cap:
        return dpad, dpad                       # one block covers the whole axis
    cands = list(range(align, cap + 1, align))
    pads = {t: _round_up(dpad, t) for t in cands}
    min_pad = min(pads.values())
    allowed = min_pad + max(align, min_pad // 8)
    tile = max(t for t in cands if pads[t] <= allowed)
    return tile, pads[tile]


def _stage1_row_tile(wdp, hp, itemsize, budget_bytes=1 * _MIB):
    """Largest row-block of W^T that divides Wdp and fits the VMEM budget."""
    for t in (wdp, 2048, 1024, 512, 256, 128, 64, 32, 16, 8):
        if t <= wdp and wdp % t == 0 and t * hp * itemsize <= budget_bytes:
            return t
    return 8  # Wdp is always a multiple of 128, so 8 divides it.


def _weight_spec(tk, tn, deep):
    index_map = lambda i, j, k: (k, j)
    if deep:
        # Deeper buffering on the weight stream in the weight-bandwidth-bound
        # regime; fall back silently if this JAX version lacks pipeline_mode.
        try:
            return pl.BlockSpec((tk, tn), index_map, pipeline_mode=pl.Buffered(3))
        except (AttributeError, TypeError):
            pass
    return pl.BlockSpec((tk, tn), index_map)


# ---------------------------------------------------------------------------
# Wrapper
# ---------------------------------------------------------------------------
@functools.partial(jax.jit, static_argnames=("matmul_dtype",))
def spectral_norm_linear(x, weight_bar, bias, u, *, matmul_dtype=jnp.bfloat16):
    """SpectralNorm(nn.Linear) forward.

    x:(B,Wd), weight_bar:(H,Wd), bias:(1,H) or (H,), u:(1,H) or (H,)
      -> (y:(B,H) f32, u_new:(1,H) f32, v:(1,Wd) f32)

    matmul_dtype=jnp.bfloat16 (default): bf16 MXU inputs, f32 accumulation and
    f32 norm/sigma math (recommended on v5e/v6e/v7x).
    matmul_dtype=jnp.float32: strict PyTorch-parity mode.
    """
    B, Wd = x.shape
    H, _ = weight_bar.shape
    mm_dtype = jnp.dtype(matmul_dtype)
    itemsize = mm_dtype.itemsize

    # ---- Tile / padding selection ------------------------------------------
    tm, Bp = _choose_tile(B, 1024, 8)        # whole padded batch up to 1024
    tn, Hp = _choose_tile(H, 1024, 128)
    tk, Wdp = _choose_tile(Wd, 1024, 128)

    # v7x megacore: keep >=2 blocks along a parallel axis when it costs no
    # extra padding (prefer splitting N so the weight is not re-read).
    if (Bp // tm) * (Hp // tn) < 2:
        if tn == Hp and Hp % 256 == 0:
            tn = Hp // 2
        elif tm == Bp and Bp % 16 == 0:
            tm = Bp // 2

    # ---- One-time layout plumbing: padded, transposed, in the MXU dtype -----
    wt_p = jnp.zeros((Wdp, Hp), mm_dtype).at[:Wd, :H].set(
        weight_bar.T.astype(mm_dtype))
    x_p = jnp.zeros((Bp, Wdp), mm_dtype).at[:B, :Wd].set(x.astype(mm_dtype))
    b_p = jnp.zeros((1, Hp), jnp.float32).at[:, :H].set(
        bias.reshape(1, H).astype(jnp.float32))
    u_p = jnp.zeros((1, Hp), jnp.float32).at[:, :H].set(
        u.reshape(1, H).astype(jnp.float32))

    # ---- Stage 1: tiled power iteration --------------------------------------
    tkw = _stage1_row_tile(Wdp, Hp, itemsize)
    u_new_p, v_raw_p, inv_nv, inv_scale = pl.pallas_call(
        _power_iter_kernel,
        out_shape=(
            jax.ShapeDtypeStruct((1, Hp), jnp.float32),
            jax.ShapeDtypeStruct((Wdp, 1), jnp.float32),
            jax.ShapeDtypeStruct((1, 1), jnp.float32),
            jax.ShapeDtypeStruct((1, 1), jnp.float32),
        ),
        grid_spec=pltpu.PrefetchScalarGridSpec(
            num_scalar_prefetch=0,
            grid=(Wdp // tkw,),
            in_specs=[
                pl.BlockSpec((tkw, Hp), lambda k: (k, 0)),    # W^T row block
                pl.BlockSpec((1, Hp), lambda k: (0, 0)),      # u
            ],
            out_specs=(
                pl.BlockSpec((1, Hp), lambda k: (0, 0)),      # u_new
                pl.BlockSpec((tkw, 1), lambda k: (k, 0)),     # v_raw (column)
                pl.BlockSpec((1, 1), lambda k: (0, 0)),       # 1/(||v_raw||+eps)
                pl.BlockSpec((1, 1), lambda k: (0, 0)),       # 1/(0.5*sigma)
            ),
            scratch_shapes=[pltpu.VMEM((1, Hp), jnp.float32),
                            pltpu.VMEM((1, 1), jnp.float32)],
        ),
        compiler_params=pltpu.CompilerParams(
            dimension_semantics=("arbitrary",),
            vmem_limit_bytes=32 * _MIB,
        ),
    )(wt_p, u_p)

    # ---- Stage 2: tiled, pipelined Linear with folded spectral scale ---------
    grid = (Bp // tm, Hp // tn, Wdp // tk)
    deep_w = (Bp <= 512) and (grid[2] >= 3)       # weight-bandwidth-bound regime
    vmem_est = (2 * tm * tk * itemsize
                + (3 if deep_w else 2) * tk * tn * itemsize
                + 2 * tm * tn * 4
                + 2 * tn * 4)
    vmem_limit = min(48 * _MIB, vmem_est + 16 * _MIB)   # v7x-safe (<64 MiB phys)

    y_p = pl.pallas_call(
        _sn_linear_kernel,
        out_shape=jax.ShapeDtypeStruct((Bp, Hp), jnp.float32),
        grid_spec=pltpu.PrefetchScalarGridSpec(
            num_scalar_prefetch=0,
            grid=grid,
            in_specs=[
                pl.BlockSpec(memory_space=pltpu.SMEM),             # inv_scale (1,1)
                pl.BlockSpec((tm, tk), lambda i, j, k: (i, k)),    # x tile
                _weight_spec(tk, tn, deep_w),                      # W^T tile
                pl.BlockSpec((1, tn), lambda i, j, k: (0, j)),     # bias tile
            ],
            out_specs=pl.BlockSpec((tm, tn), lambda i, j, k: (i, j)),
        ),
        compiler_params=pltpu.CompilerParams(
            dimension_semantics=("parallel", "parallel", "arbitrary"),
            vmem_limit_bytes=vmem_limit,
        ),
    )(inv_scale, x_p, wt_p, b_p)

    y = y_p[:B, :H]
    u_new = u_new_p[:, :H]
    v = (v_raw_p[:Wd, 0] * inv_nv[0, 0]).reshape(1, Wd)
    # TODO(synk): u_new / v are buffer state in the PyTorch module (weight_u /
    # weight_v); wrap them in jax.lax.stop_gradient if this op is differentiated.
    return y, u_new, v


# ---------------------------------------------------------------------------
# Pure-JAX reference of the PyTorch forward
# ---------------------------------------------------------------------------
def _l2normalize(v, eps=EPS):
    return v / (jnp.linalg.norm(v) + eps)


def _reference(x, w, b, u):
    hi = functools.partial(jnp.matmul, precision=jax.lax.Precision.HIGHEST)
    u0 = u.reshape(-1)
    v = _l2normalize(hi(w.T, u0))
    u1 = _l2normalize(hi(w, v))
    sigma = jnp.dot(u1, hi(w, v), precision=jax.lax.Precision.HIGHEST)
    w_sn = w / (0.5 * sigma)
    y = hi(x, w_sn.T) + b.reshape(-1)
    return y, u1, v


def _run_case(key, batch, in_features, out_features):
    k_x, k_w, k_b, k_u = jax.random.split(key, 4)
    x = jax.random.normal(k_x, (batch, in_features), jnp.float32)
    w = jax.random.normal(k_w, (out_features, in_features), jnp.float32) * 0.1
    b = jax.random.normal(k_b, (1, out_features), jnp.float32) * 0.1
    u0 = jax.random.normal(k_u, (out_features,), jnp.float32)
    u0 = _l2normalize(u0).reshape(1, out_features)

    y_ref, u_ref, v_ref = _reference(x, w, b, u0)

    # Strict f32 mode: exact PyTorch-parity semantics.
    y, u1, v1 = spectral_norm_linear(x, w, b, u0, matmul_dtype=jnp.float32)
    jax.block_until_ready((y, u1, v1))
    assert jnp.allclose(y, y_ref, atol=1e-4, rtol=1e-4)
    assert jnp.allclose(u1.reshape(-1), u_ref, atol=1e-5, rtol=1e-5)
    assert jnp.allclose(v1.reshape(-1), v_ref, atol=1e-5, rtol=1e-5)

    # Default bf16 MXU mode (f32 accumulation / f32 sigma math).
    yb, ub, vb = spectral_norm_linear(x, w, b, u0)
    jax.block_until_ready((yb, ub, vb))
    assert jnp.allclose(yb, y_ref, atol=1e-1, rtol=5e-2)
    assert jnp.allclose(ub.reshape(-1), u_ref, atol=2e-2, rtol=2e-2)
    assert jnp.allclose(vb.reshape(-1), v_ref, atol=2e-2, rtol=2e-2)


if __name__ == "__main__":
    key = jax.random.PRNGKey(0)
    k1, k2 = jax.random.split(key)
    _run_case(k1, 8, 32, 16)        # tiny: single tile everywhere
    _run_case(k2, 40, 1600, 264)    # ragged padding + multi-step K reduction
    print("KERNEL_OK")
</pallas_src>

<mosaic_0001>
module attributes {stable_mosaic.version = 11 : i64} {
  func.func @_sn_linear_kernel(%arg0: i32, %arg1: i32, %arg2: i32, %arg3: memref<1x1xf32, #tpu.memory_space<smem>>, %arg4: memref<8x128xf32, #tpu.memory_space<vmem>>, %arg5: memref<128x128xf32, #tpu.memory_space<vmem>>, %arg6: memref<1x128xf32, #tpu.memory_space<vmem>>, %arg7: memref<8x128xf32, #tpu.memory_space<vmem>>) attributes {dimension_semantics = [#tpu.dimension_semantics<parallel>, #tpu.dimension_semantics<parallel>, #tpu.dimension_semantics<arbitrary>], iteration_bounds = array<i64: 1, 1, 1>, scalar_prefetch = 0 : i64, scratch_operands = 0 : i64, tpu.core_type = #tpu.core_type<tc>, window_params = [{transform_indices = @transform_0, window_bounds = array<i64: 1, 1>}, {transform_indices = @transform_1, window_bounds = array<i64: 8, 128>}, {transform_indices = @transform_2, window_bounds = array<i64: 128, 128>}, {transform_indices = @transform_3, window_bounds = array<i64: 1, 128>}, {transform_indices = @transform_4, window_bounds = array<i64: 8, 128>}]} {
    %c0 = arith.constant 0 : index
    %c0_0 = arith.constant 0 : index
    %0 = vector.load %arg4[%c0, %c0_0] : memref<8x128xf32, #tpu.memory_space<vmem>>, vector<8x128xf32>
    %c0_1 = arith.constant 0 : index
    %c0_2 = arith.constant 0 : index
    %1 = vector.load %arg5[%c0_1, %c0_2] : memref<128x128xf32, #tpu.memory_space<vmem>>, vector<128x128xf32>
    %cst = arith.constant dense<0.000000e+00> : vector<8x128xf32>
    %2 = tpu.matmul %0, %1, %cst {dimension_numbers = #tpu.dot_dimension_numbers<[1], [0], [0], [1], [0, 0, 1, 1], [], []>} : vector<8x128xf32>, vector<128x128xf32>, vector<8x128xf32> -> vector<8x128xf32>
    %c0_i32 = arith.constant 0 : i32
    %3 = arith.cmpi eq, %arg2, %c0_i32 : i32
    %4 = arith.extui %3 : i1 to i32
    %c0_i32_3 = arith.constant 0 : i32
    %5 = arith.cmpi ne, %4, %c0_i32_3 : i32
    scf.if %5 {
      %c0_8 = arith.constant 0 : index
      %c0_9 = arith.constant 0 : index
      %12 = vector.load %arg7[%c0_8, %c0_9] : memref<8x128xf32, #tpu.memory_space<vmem>>, vector<8x128xf32>
      tpu.vector_store %arg7[%c0_8, %c0_9], %2 {strides = array<i32>} : memref<8x128xf32, #tpu.memory_space<vmem>>, vector<8x128xf32>,
    } else {
    }
    %c0_i32_4 = arith.constant 0 : i32
    %6 = arith.cmpi sgt, %arg2, %c0_i32_4 : i32
    %7 = arith.extui %6 : i1 to i32
    %c0_i32_5 = arith.constant 0 : i32
    %8 = arith.cmpi ne, %7, %c0_i32_5 : i32
    scf.if %8 {
      %c0_8 = arith.constant 0 : index
      %c0_9 = arith.constant 0 : index
      %12 = vector.load %arg7[%c0_8, %c0_9] : memref<8x128xf32, #tpu.memory_space<vmem>>, vector<8x128xf32>
      %13 = arith.addf %12, %2 : vector<8x128xf32>
      %c0_10 = arith.constant 0 : index
      %c0_11 = arith.constant 0 : index
      %14 = vector.load %arg7[%c0_10, %c0_11] : memref<8x128xf32, #tpu.memory_space<vmem>>, vector<8x128xf32>
      tpu.vector_store %arg7[%c0_10, %c0_11], %13 {strides = array<i32>} : memref<8x128xf32, #tpu.memory_space<vmem>>, vector<8x128xf32>,
    } else {
    }
    %c0_i32_6 = arith.constant 0 : i32
    %9 = arith.cmpi eq, %arg2, %c0_i32_6 : i32
    %10 = arith.extui %9 : i1 to i32
    %c0_i32_7 = arith.constant 0 : i32
    %11 = arith.cmpi ne, %10, %c0_i32_7 : i32
    scf.if %11 {
      %c0_8 = arith.constant 0 : index
      %c0_9 = arith.constant 0 : index
      %12 = vector.load %arg7[%c0_8, %c0_9] : memref<8x128xf32, #tpu.memory_space<vmem>>, vector<8x128xf32>
      %c0_10 = arith.constant 0 : index
      %c0_11 = arith.constant 0 : index
      %13 = memref.load %arg3[%c0_10, %c0_11] : memref<1x1xf32, #tpu.memory_space<smem>>
      %14 = vector.broadcast %13 : f32 to vector<8x128xf32>
      %15 = arith.mulf %12, %14 : vector<8x128xf32>
      %c0_12 = arith.constant 0 : index
      %c0_13 = arith.constant 0 : index
      %16 = vector.load %arg6[%c0_12, %c0_13] : memref<1x128xf32, #tpu.memory_space<vmem>>, vector<1x128xf32>
      %17 = vector.broadcast %16 : vector<1x128xf32> to vector<8x128xf32>
      %18 = arith.addf %15, %17 : vector<8x128xf32>
      %c0_14 = arith.constant 0 : index
      %c0_15 = arith.constant 0 : index
      %19 = vector.load %arg7[%c0_14, %c0_15] : memref<8x128xf32, #tpu.memory_space<vmem>>, vector<8x128xf32>
      tpu.vector_store %arg7[%c0_14, %c0_15], %18 {strides = array<i32>} : memref<8x128xf32, #tpu.memory_space<vmem>>, vector<8x128xf32>,
    } else {
    }
    return
  }
  func.func @transform_0(%arg0: i32, %arg1: i32, %arg2: i32) -> (i32, i32) {
    %c0_i32 = arith.constant 0 : i32
    %c0_i32_0 = arith.constant 0 : i32
    %c0_i32_1 = arith.constant 0 : i32
    return %c0_i32, %c0_i32_0 : i32, i32
  }
  func.func @transform_1(%arg0: i32, %arg1: i32, %arg2: i32) -> (i32, i32) {
    %c0_i32 = arith.constant 0 : i32
    return %arg0, %arg2 : i32, i32
  }
  func.func @transform_2(%arg0: i32, %arg1: i32, %arg2: i32) -> (i32, i32) {
    %c0_i32 = arith.constant 0 : i32
    return %arg2, %arg1 : i32, i32
  }
  func.func @transform_3(%arg0: i32, %arg1: i32, %arg2: i32) -> (i32, i32) {
    %c0_i32 = arith.constant 0 : i32
    %c0_i32_0 = arith.constant 0 : i32
    return %c0_i32, %arg1 : i32, i32
  }
  func.func @transform_4(%arg0: i32, %arg1: i32, %arg2: i32) -> (i32, i32) {
    %c0_i32 = arith.constant 0 : i32
    return %arg0, %arg1 : i32, i32
  }
}

module attributes {stable_mosaic.version = 11 : i64} {
  func.func @_power_iter_kernel(%arg0: i32, %arg1: memref<128x128xf32, #tpu.memory_space<vmem>>, %arg2: memref<1x128xf32, #tpu.memory_space<vmem>>, %arg3: memref<1x128xf32, #tpu.memory_space<vmem>>, %arg4: memref<128x1xf32, #tpu.memory_space<vmem>>, %arg5: memref<1x1xf32, #tpu.memory_space<vmem>>, %arg6: memref<1x1xf32, #tpu.memory_space<vmem>>, %arg7: memref<1x128xf32, #tpu.memory_space<vmem>>, %arg8: memref<1x1xf32, #tpu.memory_space<vmem>>) attributes {dimension_semantics = [#tpu.dimension_semantics<arbitrary>], iteration_bounds = array<i64: 1>, scalar_prefetch = 0 : i64, scratch_operands = 2 : i64, tpu.core_type = #tpu.core_type<tc>, window_params = [{transform_indices = @transform_0, window_bounds = array<i64: 128, 128>}, {pipeline_mode = #tpu.pipeline_mode<synchronous>, transform_indices = @transform_1, window_bounds = array<i64: 1, 128>}, {pipeline_mode = #tpu.pipeline_mode<synchronous>, transform_indices = @transform_2, window_bounds = array<i64: 1, 128>}, {transform_indices = @transform_3, window_bounds = array<i64: 128, 1>}, {pipeline_mode = #tpu.pipeline_mode<synchronous>, transform_indices = @transform_4, window_bounds = array<i64: 1, 1>}, {pipeline_mode = #tpu.pipeline_mode<synchronous>, transform_indices = @transform_5, window_bounds = array<i64: 1, 1>}]} {
    %c0_i32 = arith.constant 0 : i32
    %0 = arith.cmpi eq, %arg0, %c0_i32 : i32
    %1 = arith.extui %0 : i1 to i32
    %c0_i32_0 = arith.constant 0 : i32
    %2 = arith.cmpi ne, %1, %c0_i32_0 : i32
    scf.if %2 {
      %cst_18 = arith.constant 0.000000e+00 : f32
      %29 = vector.broadcast %cst_18 : f32 to vector<1x128xf32>
      %c0_19 = arith.constant 0 : index
      %c0_20 = arith.constant 0 : index
      %30 = vector.load %arg7[%c0_19, %c0_20] : memref<1x128xf32, #tpu.memory_space<vmem>>, vector<1x128xf32>
      tpu.vector_store %arg7[%c0_19, %c0_20], %29 {strides = array<i32>} : memref<1x128xf32, #tpu.memory_space<vmem>>, vector<1x128xf32>,
      %cst_21 = arith.constant 0.000000e+00 : f32
      %31 = vector.broadcast %cst_21 : f32 to vector<1x1xf32>
      %c0_22 = arith.constant 0 : index
      %c0_23 = arith.constant 0 : index
      %32 = vector.load %arg8[%c0_22, %c0_23] : memref<1x1xf32, #tpu.memory_space<vmem>>, vector<1x1xf32>
      tpu.vector_store %arg8[%c0_22, %c0_23], %31 {strides = array<i32>} : memref<1x1xf32, #tpu.memory_space<vmem>>, vector<1x1xf32>,
    } else {
    }
    %c0 = arith.constant 0 : index
    %c0_1 = arith.constant 0 : index
    %3 = vector.load %arg1[%c0, %c0_1] : memref<128x128xf32, #tpu.memory_space<vmem>>, vector<128x128xf32>
    %c0_2 = arith.constant 0 : index
    %c0_3 = arith.constant 0 : index
    %4 = vector.load %arg2[%c0_2, %c0_3] : memref<1x128xf32, #tpu.memory_space<vmem>>, vector<1x128xf32>
    %5 = vector.broadcast %4 : vector<1x128xf32> to vector<128x128xf32>
    %6 = arith.mulf %3, %5 : vector<128x128xf32>
    %cst = arith.constant dense<0.000000e+00> : vector<128xf32>
    %7 = vector.multi_reduction <add>, %6, %cst [1] : vector<128x128xf32> to vector<128xf32>
    %8 = vector.shape_cast %7 : vector<128xf32> to vector<128x1xf32>
    %c0_4 = arith.constant 0 : index
    %c0_5 = arith.constant 0 : index
    %9 = vector.load %arg4[%c0_4, %c0_5] : memref<128x1xf32, #tpu.memory_space<vmem>>, vector<128x1xf32>
    tpu.vector_store %arg4[%c0_4, %c0_5], %8 {strides = array<i32>} : memref<128x1xf32, #tpu.memory_space<vmem>>, vector<128x1xf32>,
    %c0_6 = arith.constant 0 : index
    %c0_7 = arith.constant 0 : index
    %10 = vector.load %arg8[%c0_6, %c0_7] : memref<1x1xf32, #tpu.memory_space<vmem>>, vector<1x1xf32>
    %11 = arith.mulf %8, %8 : vector<128x1xf32>
    %12 = vector.shape_cast %11 : vector<128x1xf32> to vector<1x128x1xf32>
    %cst_8 = arith.constant dense<0.000000e+00> : vector<1xf32>
    %13 = vector.multi_reduction <add>, %12, %cst_8 [1, 2] : vector<1x128x1xf32> to vector<1xf32>
    %14 = vector.shape_cast %13 : vector<1xf32> to vector<1x1x1xf32>
    %15 = vector.extract %14[0, 0, 0] : f32 from vector<1x1x1xf32>
    %16 = vector.broadcast %15 : f32 to vector<1x1xf32>
    %17 = arith.addf %10, %16 : vector<1x1xf32>
    %c0_9 = arith.constant 0 : index
    %c0_10 = arith.constant 0 : index
    %18 = vector.load %arg8[%c0_9, %c0_10] : memref<1x1xf32, #tpu.memory_space<vmem>>, vector<1x1xf32>
    tpu.vector_store %arg8[%c0_9, %c0_10], %17 {strides = array<i32>} : memref<1x1xf32, #tpu.memory_space<vmem>>, vector<1x1xf32>,
    %c0_11 = arith.constant 0 : index
    %c0_12 = arith.constant 0 : index
    %19 = vector.load %arg7[%c0_11, %c0_12] : memref<1x128xf32, #tpu.memory_space<vmem>>, vector<1x128xf32>
    %20 = vector.broadcast %8 : vector<128x1xf32> to vector<128x128xf32>
    %21 = arith.mulf %3, %20 : vector<128x128xf32>
    %cst_13 = arith.constant dense<0.000000e+00> : vector<128xf32>
    %22 = vector.multi_reduction <add>, %21, %cst_13 [0] : vector<128x128xf32> to vector<128xf32>
    %23 = vector.shape_cast %22 : vector<128xf32> to vector<1x128xf32>
    %24 = arith.addf %19, %23 : vector<1x128xf32>
    %c0_14 = arith.constant 0 : index
    %c0_15 = arith.constant 0 : index
    %25 = vector.load %arg7[%c0_14, %c0_15] : memref<1x128xf32, #tpu.memory_space<vmem>>, vector<1x128xf32>
    tpu.vector_store %arg7[%c0_14, %c0_15], %24 {strides = array<i32>} : memref<1x128xf32, #tpu.memory_space<vmem>>, vector<1x128xf32>,
    %c0_i32_16 = arith.constant 0 : i32
    %26 = arith.cmpi eq, %arg0, %c0_i32_16 : i32
    %27 = arith.extui %26 : i1 to i32
    %c0_i32_17 = arith.constant 0 : i32
    %28 = arith.cmpi ne, %27, %c0_i32_17 : i32
    scf.if %28 {
      %c0_18 = arith.constant 0 : index
      %c0_19 = arith.constant 0 : index
      %29 = vector.load %arg8[%c0_18, %c0_19] : memref<1x1xf32, #tpu.memory_space<vmem>>, vector<1x1xf32>
      %30 = math.sqrt %29 : vector<1x1xf32>
      %cst_20 = arith.constant 9.99999996E-13 : f32
      %31 = vector.broadcast %cst_20 : f32 to vector<1x1xf32>
      %32 = arith.addf %30, %31 : vector<1x1xf32>
      %cst_21 = arith.constant 1.000000e+00 : f32
      %33 = vector.broadcast %cst_21 : f32 to vector<1x1xf32>
      %34 = arith.divf %33, %32 : vector<1x1xf32>
      %c0_22 = arith.constant 0 : index
      %c0_23 = arith.constant 0 : index
      %35 = vector.load %arg7[%c0_22, %c0_23] : memref<1x128xf32, #tpu.memory_space<vmem>>, vector<1x128xf32>
      %36 = vector.broadcast %34 : vector<1x1xf32> to vector<1x128xf32>
      %37 = arith.mulf %35, %36 : vector<1x128xf32>
      %38 = arith.mulf %37, %37 : vector<1x128xf32>
      %39 = vector.shape_cast %38 : vector<1x128xf32> to vector<1x1x128xf32>
      %cst_24 = arith.constant dense<0.000000e+00> : vector<1xf32>
      %40 = vector.multi_reduction <add>, %39, %cst_24 [1, 2] : vector<1x1x128xf32> to vector<1xf32>
      %41 = vector.shape_cast %40 : vector<1xf32> to vector<1x1x1xf32>
      %42 = vector.extract %41[0, 0, 0] : f32 from vector<1x1x1xf32>
      %43 = vector.broadcast %42 : f32 to vector<1x1xf32>
      %44 = math.sqrt %43 : vector<1x1xf32>
      %cst_25 = arith.constant 9.99999996E-13 : f32
      %45 = vector.broadcast %cst_25 : f32 to vector<1x1xf32>
      %46 = arith.addf %44, %45 : vector<1x1xf32>
      %cst_26 = arith.constant 1.000000e+00 : f32
      %47 = vector.broadcast %cst_26 : f32 to vector<1x1xf32>
      %48 = arith.divf %47, %46 : vector<1x1xf32>
      %49 = vector.broadcast %48 : vector<1x1xf32> to vector<1x128xf32>
      %50 = arith.mulf %37, %49 : vector<1x128xf32>
      %c0_27 = arith.constant 0 : index
      %c0_28 = arith.constant 0 : index
      %51 = vector.load %arg3[%c0_27, %c0_28] : memref<1x128xf32, #tpu.memory_space<vmem>>, vector<1x128xf32>
      tpu.vector_store %arg3[%c0_27, %c0_28], %50 {strides = array<i32>} : memref<1x128xf32, #tpu.memory_space<vmem>>, vector<1x128xf32>,
      %52 = arith.mulf %43, %48 : vector<1x1xf32>
      %c0_29 = arith.constant 0 : index
      %c0_30 = arith.constant 0 : index
      %53 = vector.load %arg5[%c0_29, %c0_30] : memref<1x1xf32, #tpu.memory_space<vmem>>, vector<1x1xf32>
      tpu.vector_store %arg5[%c0_29, %c0_30], %34 {strides = array<i32>} : memref<1x1xf32, #tpu.memory_space<vmem>>, vector<1x1xf32>,
      %cst_31 = arith.constant 5.000000e-01 : f32
      %54 = vector.broadcast %cst_31 : f32 to vector<1x1xf32>
      %55 = arith.mulf %54, %52 : vector<1x1xf32>
      %cst_32 = arith.constant 1.000000e+00 : f32
      %56 = vector.broadcast %cst_32 : f32 to vector<1x1xf32>
      %57 = arith.divf %56, %55 : vector<1x1xf32>
      %c0_33 = arith.constant 0 : index
      %c0_34 = arith.constant 0 : index
      %58 = vector.load %arg6[%c0_33, %c0_34] : memref<1x1xf32, #tpu.memory_space<vmem>>, vector<1x1xf32>
      tpu.vector_store %arg6[%c0_33, %c0_34], %57 {strides = array<i32>} : memref<1x1xf32, #tpu.memory_space<vmem>>, vector<1x1xf32>,
    } else {
    }
    return
  }
  func.func @transform_0(%arg0: i32) -> (i32, i32) {
    %c0_i32 = arith.constant 0 : i32
    %c0_i32_0 = arith.constant 0 : i32
    return %arg0, %c0_i32 : i32, i32
  }
  func.func @transform_1(%arg0: i32) -> (i32, i32) {
    %c0_i32 = arith.constant 0 : i32
    %c0_i32_0 = arith.constant 0 : i32
    %c0_i32_1 = arith.constant 0 : i32
    return %c0_i32, %c0_i32_0 : i32, i32
  }
  func.func @transform_2(%arg0: i32) -> (i32, i32) {
    %c0_i32 = arith.constant 0 : i32
    %c0_i32_0 = arith.constant 0 : i32
    %c0_i32_1 = arith.constant 0 : i32
    return %c0_i32, %c0_i32_0 : i32, i32
  }
  func.func @transform_3(%arg0: i32) -> (i32, i32) {
    %c0_i32 = arith.constant 0 : i32
    %c0_i32_0 = arith.constant 0 : i32
    return %arg0, %c0_i32 : i32, i32
  }
  func.func @transform_4(%arg0: i32) -> (i32, i32) {
    %c0_i32 = arith.constant 0 : i32
    %c0_i32_0 = arith.constant 0 : i32
    %c0_i32_1 = arith.constant 0 : i32
    return %c0_i32, %c0_i32_0 : i32, i32
  }
  func.func @transform_5(%arg0: i32) -> (i32, i32) {
    %c0_i32 = arith.constant 0 : i32
    %c0_i32_0 = arith.constant 0 : i32
    %c0_i32_1 = arith.constant 0 : i32
    return %c0_i32, %c0_i32_0 : i32, i32
  }
}

</mosaic_0001>

<llo_original>
// kernel: spectral_norm_linear.2
$region0: #{spectral_norm_linear.2}
  #allocation0 [shape = 'u32[]', space=smem, size = 0x4, offset = 0x4, fixed_abs, tag = 'smem constant byte address 0x4 - core index']
  #allocation1 [shape = 'u32[144,128]{1,0:T(1,128)}', space=vmem, size = 0x12000, scoped, tag = 'internal scratch']
  #allocation2 [shape = 'f32[1,128]{1,0:T(1,128)}', space=vmem, size = 0x200, scoped, tag = 'scratch operand']
  #allocation3 [shape = 'f32[1,1]{1,0:T(1,128)}', space=vmem, size = 0x200, scoped, tag = 'scratch operand']
  %s0 = inlined_call_operand.vmem [shape: f32[128,128], index: 0, kind: input, shape index: {}]
  %s1 = inlined_call_operand.vmem [shape: f32[1,128], index: 1, kind: input, shape index: {}]
  %s2 = inlined_call_operand.hbm [shape: f32[1,128], index: 2, kind: output, shape index: {0}]
  %s3 = inlined_call_operand.vmem [shape: f32[128,1], index: 3, kind: output, shape index: {1}]
  %s4 = inlined_call_operand.hbm [shape: f32[1,1], index: 4, kind: output, shape index: {2}]
  %s5 = inlined_call_operand.hbm [shape: f32[1,1], index: 5, kind: output, shape index: {3}]
  %6 = xla_tuple %s2, %s3, %s4, %s5
  %s7 = sld [smem:[#allocation0]]
  $region50: #{spectral_norm_linear.2} parent=0
    _
  %s9 = ssub.s32 1, %s7
  %s10 = scalar_select 0, %s9, %s7
  $region1: #{spectral_norm_linear.2} parent=0
    #allocation4 [shape = 'u8[512]{0}', space=vmem, size = 0x400, scoped, tag = 'output window, operand 0, single buffered']
    #allocation5 [shape = 's32[1]{0}', space=sflag, size = 0x4, scoped, tag = 'scoped memory for spectral_norm_linear.2']
    #allocation6 [shape = 'u8[512]{0}', space=vmem, size = 0x400, scoped, tag = 'output window, operand 2, single buffered']
    #allocation7 [shape = 's32[1]{0}', space=sflag, size = 0x4, scoped, tag = 'scoped memory for spectral_norm_linear.2']
    #allocation8 [shape = 'u8[512]{0}', space=vmem, size = 0x400, scoped, tag = 'output window, operand 3, single buffered']
    %11 = vsyncpa [#allocation5], 0
    %12 = vsyncpa [#allocation7], 0
    // Predicated region
    $region2: #{spectral_norm_linear.2} parent=1 // pred_check
      _
    $region3: #{spectral_norm_linear.2} parent=1 // pred_check_branch
      %14 = sbr.rel (0) target = $region5
    $region4: #{spectral_norm_linear.2} parent=1 // pred_region
      _
    $region5: #{spectral_norm_linear.2} parent=1 // pred_fallthru
      _
    // Predicated region
    $region6: #{spectral_norm_linear.2} parent=1 // pred_check
      _
    $region7: #{spectral_norm_linear.2} parent=1 // pred_check_branch
      %16 = sbr.rel (0) target = $region9
    $region8: #{spectral_norm_linear.2} parent=1 // pred_region
      _
    $region9: #{spectral_norm_linear.2} parent=1 // pred_fallthru
      _
    %p17 = scmp.eq.s32.totalorder 0, 0
    // Predicated region
    $region10: #{spectral_norm_linear.2} parent=1 // pred_check
      %p18 = pneg %p17
    $region11: #{spectral_norm_linear.2} parent=1 // pred_check_branch
      %20 = sbr.rel (%p18) target = $region13
    $region12: #{spectral_norm_linear.2} parent=1 // pred_region
      %21 = vst [vmem:[#allocation2] sm:$0x1] 0.0
      %vm22 = vcmask 0
      %23 = vst.msk [vmem:[#allocation3] sm:$0x1] %vm22, 0.0
    $region13: #{spectral_norm_linear.2} parent=1 // pred_fallthru
      _
    %v24 = vld [vmem:[%s0] sm:$0xff]
    %v25 = vld [vmem:[%s0 + $0x8] sm:$0xff]
    %v26 = vld [vmem:[%s0 + $0x10] sm:$0xff]
    %v27 = vld [vmem:[%s0 + $0x18] sm:$0xff]
    %v28 = vld [vmem:[%s0 + $0x20] sm:$0xff]
    %v29 = vld [vmem:[%s0 + $0x28] sm:$0xff]
    %v30 = vld [vmem:[%s0 + $0x30] sm:$0xff]
    %v31 = vld [vmem:[%s0 + $0x38] sm:$0xff]
    %v32 = vld [vmem:[%s0 + $0x40] sm:$0xff]
    %v33 = vld [vmem:[%s0 + $0x48] sm:$0xff]
    %v34 = vld [vmem:[%s0 + $0x50] sm:$0xff]
    %v35 = vld [vmem:[%s0 + $0x58] sm:$0xff]
    %v36 = vld [vmem:[%s0 + $0x60] sm:$0xff]
    %v37 = vld [vmem:[%s0 + $0x68] sm:$0xff]
    %v38 = vld [vmem:[%s0 + $0x70] sm:$0xff]
    %v39 = vld [vmem:[%s0 + $0x78] sm:$0xff]
    %v40 = vld [vmem:[%s1] sm:$0x1]
    %v42 = vlaneseq
    %v43 = vshrl.u32 %v42, 7
    %v44 = vsub.s32 0, %v43
    %v45 = vrot.slane %v40, %v44
    %v47 = vmul.f32 %v24, %v45
    %v48 = vmul.f32 %v25, %v45
    %v49 = vmul.f32 %v26, %v45
    %v50 = vmul.f32 %v27, %v45
    %v51 = vmul.f32 %v28, %v45
    %v52 = vmul.f32 %v29, %v45
    %v53 = vmul.f32 %v30, %v45
    %v54 = vmul.f32 %v31, %v45
    %v55 = vmul.f32 %v32, %v45
    %v56 = vmul.f32 %v33, %v45
    %v57 = vmul.f32 %v34, %v45
    %v58 = vmul.f32 %v35, %v45
    %v59 = vmul.f32 %v36, %v45
    %v60 = vmul.f32 %v37, %v45
    %v61 = vmul.f32 %v38, %v45
    %v62 = vmul.f32 %v39, %v45
    %63 = vadd.xlane.f32.xlu0 %v47
    %v64 = vpop.xlane.xlu0 %63
    %65 = vadd.xlane.f32.xlu0 %v48
    %v66 = vpop.xlane.xlu0 %65
    %67 = vadd.xlane.f32.xlu0 %v49
    %v68 = vpop.xlane.xlu0 %67
    %69 = vadd.xlane.f32.xlu0 %v50
    %v70 = vpop.xlane.xlu0 %69
    %71 = vadd.xlane.f32.xlu0 %v51
    %v72 = vpop.xlane.xlu0 %71
    %73 = vadd.xlane.f32.xlu0 %v52
    %v74 = vpop.xlane.xlu0 %73
    %75 = vadd.xlane.f32.xlu0 %v53
    %v76 = vpop.xlane.xlu0 %75
    %77 = vadd.xlane.f32.xlu0 %v54
    %v78 = vpop.xlane.xlu0 %77
    %79 = vadd.xlane.f32.xlu0 %v55
    %v80 = vpop.xlane.xlu0 %79
    %81 = vadd.xlane.f32.xlu0 %v56
    %v82 = vpop.xlane.xlu0 %81
    %83 = vadd.xlane.f32.xlu0 %v57
    %v84 = vpop.xlane.xlu0 %83
    %85 = vadd.xlane.f32.xlu0 %v58
    %v86 = vpop.xlane.xlu0 %85
    %87 = vadd.xlane.f32.xlu0 %v59
    %v88 = vpop.xlane.xlu0 %87
    %89 = vadd.xlane.f32.xlu0 %v60
    %v90 = vpop.xlane.xlu0 %89
    %91 = vadd.xlane.f32.xlu0 %v61
    %v92 = vpop.xlane.xlu0 %91
    %93 = vadd.xlane.f32.xlu0 %v62
    %v94 = vpop.xlane.xlu0 %93
    %vm95 = vcmask 7168
    %96 = vst.msk [vmem:[%s3] sm:$0xff] %vm95, %v64
    %97 = vst.msk [vmem:[%s3 + $0x8] sm:$0xff] %vm95, %v66
    %98 = vst.msk [vmem:[%s3 + $0x10] sm:$0xff] %vm95, %v68
    %99 = vst.msk [vmem:[%s3 + $0x18] sm:$0xff] %vm95, %v70
    %100 = vst.msk [vmem:[%s3 + $0x20] sm:$0xff] %vm95, %v72
    %101 = vst.msk [vmem:[%s3 + $0x28] sm:$0xff] %vm95, %v74
    %102 = vst.msk [vmem:[%s3 + $0x30] sm:$0xff] %vm95, %v76
    %103 = vst.msk [vmem:[%s3 + $0x38] sm:$0xff] %vm95, %v78
    %104 = vst.msk [vmem:[%s3 + $0x40] sm:$0xff] %vm95, %v80
    %105 = vst.msk [vmem:[%s3 + $0x48] sm:$0xff] %vm95, %v82
    %106 = vst.msk [vmem:[%s3 + $0x50] sm:$0xff] %vm95, %v84
    %107 = vst.msk [vmem:[%s3 + $0x58] sm:$0xff] %vm95, %v86
    %108 = vst.msk [vmem:[%s3 + $0x60] sm:$0xff] %vm95, %v88
    %109 = vst.msk [vmem:[%s3 + $0x68] sm:$0xff] %vm95, %v90
    %110 = vst.msk [vmem:[%s3 + $0x70] sm:$0xff] %vm95, %v92
    %111 = vst.msk [vmem:[%s3 + $0x78] sm:$0xff] %vm95, %v94
    %v112 = vld [vmem:[#allocation3] sm:$0x1]
    %v113 = vmul.f32 %v64, %v64
    %v114 = vmul.f32 %v66, %v66
    %v115 = vmul.f32 %v68, %v68
    %v116 = vmul.f32 %v70, %v70
    %v117 = vmul.f32 %v72, %v72
    %v118 = vmul.f32 %v74, %v74
    %v119 = vmul.f32 %v76, %v76
    %v120 = vmul.f32 %v78, %v78
    %v121 = vmul.f32 %v80, %v80
    %v122 = vmul.f32 %v82, %v82
    %v123 = vmul.f32 %v84, %v84
    %v124 = vmul.f32 %v86, %v86
    %v125 = vmul.f32 %v88, %v88
    %v126 = vmul.f32 %v90, %v90
    %v127 = vmul.f32 %v92, %v92
    %v128 = vmul.f32 %v94, %v94
    %v129 = vsel %vm95, %v113, 0.0
    %v130 = vsel %vm95, %v114, 0.0
    %v131 = vadd.f32 %v129, %v130
    %v132 = vsel %vm95, %v115, 0.0
    %v133 = vadd.f32 %v131, %v132
    %v134 = vsel %vm95, %v116, 0.0
    %v135 = vadd.f32 %v133, %v134
    %v136 = vsel %vm95, %v117, 0.0
    %v137 = vadd.f32 %v135, %v136
    %v138 = vsel %vm95, %v118, 0.0
    %v139 = vadd.f32 %v137, %v138
    %v140 = vsel %vm95, %v119, 0.0
    %v141 = vadd.f32 %v139, %v140
    %v142 = vsel %vm95, %v120, 0.0
    %v143 = vadd.f32 %v141, %v142
    %v144 = vsel %vm95, %v121, 0.0
    %v145 = vadd.f32 %v143, %v144
    %v146 = vsel %vm95, %v122, 0.0
    %v147 = vadd.f32 %v145, %v146
    %v148 = vsel %vm95, %v123, 0.0
    %v149 = vadd.f32 %v147, %v148
    %v150 = vsel %vm95, %v124, 0.0
    %v151 = vadd.f32 %v149, %v150
    %v152 = vsel %vm95, %v125, 0.0
    %v153 = vadd.f32 %v151, %v152
    %v154 = vsel %vm95, %v126, 0.0
    %v155 = vadd.f32 %v153, %v154
    %v156 = vsel %vm95, %v127, 0.0
    %v157 = vadd.f32 %v155, %v156
    %v158 = vsel %vm95, %v128, 0.0
    %v159 = vadd.f32 %v157, %v158
    %160 = vadd.xlane.f32.xlu0 %v159
    %v161 = vpop.xlane.xlu0 %160
    %v162 = vrot.slane %v161, 4
    %v163 = vadd.f32 %v161, %v162
    %v164 = vrot.slane %v163, 2
    %v165 = vadd.f32 %v163, %v164
    %v166 = vrot.slane %v165, 1
    %v167 = vadd.f32 %v165, %v166
    %s168 = vtos %v167
    %v169 = vstv %s168
    %v170 = vadd.f32 %v112, %v169
    %vm171 = vcmask 0
    %172 = vst.msk [vmem:[#allocation3] sm:$0x1] %vm171, %v170
    %v173 = vld [vmem:[#allocation2] sm:$0x1]
    %v174 = vmul.f32 %v24, %v64
    %v175 = vmul.f32 %v25, %v66
    %v176 = vmul.f32 %v26, %v68
    %v177 = vmul.f32 %v27, %v70
    %v178 = vmul.f32 %v28, %v72
    %v179 = vmul.f32 %v29, %v74
    %v180 = vmul.f32 %v30, %v76
    %v181 = vmul.f32 %v31, %v78
    %v182 = vmul.f32 %v32, %v80
    %v183 = vmul.f32 %v33, %v82
    %v184 = vmul.f32 %v34, %v84
    %v185 = vmul.f32 %v35, %v86
    %v186 = vmul.f32 %v36, %v88
    %v187 = vmul.f32 %v37, %v90
    %v188 = vmul.f32 %v38, %v92
    %v189 = vmul.f32 %v39, %v94
    %v190 = vadd.f32 %v174, %v175
    %v191 = vadd.f32 %v190, %v176
    %v192 = vadd.f32 %v191, %v177
    %v193 = vadd.f32 %v192, %v178
    %v194 = vadd.f32 %v193, %v179
    %v195 = vadd.f32 %v194, %v180
    %v196 = vadd.f32 %v195, %v181
    %v197 = vadd.f32 %v196, %v182
    %v198 = vadd.f32 %v197, %v183
    %v199 = vadd.f32 %v198, %v184
    %v200 = vadd.f32 %v199, %v185
    %v201 = vadd.f32 %v200, %v186
    %v202 = vadd.f32 %v201, %v187
    %v203 = vadd.f32 %v202, %v188
    %v204 = vadd.f32 %v203, %v189
    %v205 = vrot.slane %v204, 4
    %v206 = vadd.f32 %v204, %v205
    %v207 = vrot.slane %v206, 2
    %v208 = vadd.f32 %v206, %v207
    %v209 = vrot.slane %v208, 1
    %v210 = vadd.f32 %v208, %v209
    %v211 = vadd.f32 %v173, %v210
    %212 = vst [vmem:[#allocation2] sm:$0x1] %v211
    // Predicated region
    $region14: #{spectral_norm_linear.2} parent=1 // pred_check
      %p213 = pneg %p17
    $region15: #{spectral_norm_linear.2} parent=1 // pred_check_branch
      %215 = sbr.rel (%p213) target = $region17
    $region16: #{spectral_norm_linear.2} parent=1 // pred_region
      %v216 = vld [vmem:[#allocation3] sm:$0x1]
      %v217 = vrsqrt.pop %v216
      %v218 = vmul.f32 %v216, %v217
      %vm219 = vcmp.eq.f32.partialorder %v216, inf
      %v220 = vsel %vm219, %v216, %v218
      %vm221 = vcmp.eq.f32.partialorder %v216, 0.0
      %v222 = vand.u32 %v216, 2147483648
      %v223 = vsel %vm221, %v222, %v220
      %v224 = vadd.f32 %v223, 1e-12
      %v225 = vrcp.pop %v224
      %v226 = vmul.f32 1.0, %v225
      %v227 = vld [vmem:[#allocation2] sm:$0x1]
      %229 = vset.pattern.permute.xlu0 0
      %230 = vperm.xlu0 %229, %v226
      %v231 = vpop.permute.xlu0 %230
      %v233 = vlaneseq
      %v234 = vshrl.u32 %v233, 7
      %v235 = vsub.s32 0, %v234
      %v236 = vrot.slane %v231, %v235
      %v237 = vmul.f32 %v227, %v236
      %v238 = vmul.f32 %v237, %v237
      %vm239 = vcmask 1040384
      %v240 = vsel %vm239, %v238, 0.0
      %241 = vadd.xlane.f32.xlu0 %v240
      %v242 = vpop.xlane.xlu0 %241
      %v243 = vrot.slane %v242, 4
      %v244 = vadd.f32 %v242, %v243
      %v245 = vrot.slane %v244, 2
      %v246 = vadd.f32 %v244, %v245
      %v247 = vrot.slane %v246, 1
      %v248 = vadd.f32 %v246, %v247
      %s249 = vtos %v248
      %v250 = vstv %s249
      %v251 = vrsqrt.pop %v250
      %v252 = vmul.f32 %v250, %v251
      %vm253 = vcmp.eq.f32.partialorder %v250, inf
      %v254 = vsel %vm253, %v250, %v252
      %vm255 = vcmp.eq.f32.partialorder %v250, 0.0
      %v256 = vand.u32 %v250, 2147483648
      %v257 = vsel %vm255, %v256, %v254
      %v258 = vadd.f32 %v257, 1e-12
      %v259 = vrcp.pop %v258
      %v260 = vmul.f32 1.0, %v259
      %v261 = vmul.f32 %v237, %v260
      %262 = vst [vmem:[#allocation4] sm:$0x1] %v261
      %v263 = vmul.f32 %v250, %v260
      %264 = vst.msk [vmem:[#allocation6] sm:$0x1] %vm171, %v226
      %v265 = vmul.f32 %v263, 0.5
      %v266 = vrcp.pop %v265
      %v267 = vmul.f32 1.0, %v266
      %268 = vst.msk [vmem:[#allocation8] sm:$0x1] %vm171, %v267
    $region17: #{spectral_norm_linear.2} parent=1 // pred_fallthru
      _
    // Predicated region
    $region18: #{spectral_norm_linear.2} parent=1 // pred_check
      _
    $region19: #{spectral_norm_linear.2} parent=1 // pred_check_branch
      %270 = sbr.rel (0) target = $region21
    $region20: #{spectral_norm_linear.2} parent=1 // pred_region
      %s272 = ssub.s32 16, 16
      %273 = vsyncadd [#allocation5], %s272
      %s275 = sshll.u32 [#allocation4], 4
      %s276 = int_to_ptr.vmem [resolvable:$true] %s275
      %278 = dma.vmem_to_hbm [thread:$0]  %s276, 16, %s2, [#allocation5]
    $region21: #{spectral_norm_linear.2} parent=1 // pred_fallthru
      _
    // Predicated region
    $region22: #{spectral_norm_linear.2} parent=1 // pred_check
      _
    $region23: #{spectral_norm_linear.2} parent=1 // pred_check_branch
      %280 = sbr.rel (0) target = $region25
    $region24: #{spectral_norm_linear.2} parent=1 // pred_region
      _
    $region25: #{spectral_norm_linear.2} parent=1 // pred_fallthru
      _
    // Predicated region
    $region26: #{spectral_norm_linear.2} parent=1 // pred_check
      _
    $region27: #{spectral_norm_linear.2} parent=1 // pred_check_branch
      %282 = sbr.rel (0) target = $region29
    $region28: #{spectral_norm_linear.2} parent=1 // pred_region
      %s284 = ssub.s32 16, 16
      %285 = vsyncadd [#allocation7], %s284
      %s287 = sshll.u32 [#allocation6], 4
      %s288 = int_to_ptr.vmem [resolvable:$true] %s287
      %290 = dma.vmem_to_hbm [thread:$0]  %s288, 16, %s4, [#allocation7]
    $region29: #{spectral_norm_linear.2} parent=1 // pred_fallthru
      _
    // Predicated region
    $region30: #{spectral_norm_linear.2} parent=1 // pred_check
      _
    $region31: #{spectral_norm_linear.2} parent=1 // pred_check_branch
      %292 = sbr.rel (0) target = $region33
    $region32: #{spectral_norm_linear.2} parent=1 // pred_region
      %s294 = ssub.s32 16, 16
      %295 = vsyncadd [#allocation7], %s294
      %s297 = sshll.u32 [#allocation8], 4
      %s298 = int_to_ptr.vmem [resolvable:$true] %s297
      %300 = dma.vmem_to_hbm [thread:$0]  %s298, 16, %s5, [#allocation7]
    $region33: #{spectral_norm_linear.2} parent=1 // pred_fallthru
      _
    // Predicated region
    $region34: #{spectral_norm_linear.2} parent=1 // pred_check
      _
    $region35: #{spectral_norm_linear.2} parent=1 // pred_check_branch
      %302 = sbr.rel (0) target = $region37
    $region36: #{spectral_norm_linear.2} parent=1 // pred_region
      %303 = dma.done [#allocation5], 16
    $region37: #{spectral_norm_linear.2} parent=1 // pred_fallthru
      _
    // Predicated region
    $region38: #{spectral_norm_linear.2} parent=1 // pred_check
      _
    $region39: #{spectral_norm_linear.2} parent=1 // pred_check_branch
      %305 = sbr.rel (0) target = $region41
    $region40: #{spectral_norm_linear.2} parent=1 // pred_region
      _
    $region41: #{spectral_norm_linear.2} parent=1 // pred_fallthru
      _
    // Predicated region
    $region42: #{spectral_norm_linear.2} parent=1 // pred_check
      _
    $region43: #{spectral_norm_linear.2} parent=1 // pred_check_branch
      %307 = sbr.rel (0) target = $region45
    $region44: #{spectral_norm_linear.2} parent=1 // pred_region
      %308 = dma.done [#allocation7], 16
    $region45: #{spectral_norm_linear.2} parent=1 // pred_fallthru
      _
    // Predicated region
    $region46: #{spectral_norm_linear.2} parent=1 // pred_check
      _
    $region47: #{spectral_norm_linear.2} parent=1 // pred_check_branch
      %310 = sbr.rel (0) target = $region49
    $region48: #{spectral_norm_linear.2} parent=1 // pred_region
      %311 = dma.done [#allocation7], 16
    $region49: #{spectral_norm_linear.2} parent=1 // pred_fallthru
      _
    %312 = vsyncpa [#allocation5], 1
    %313 = vsyncpa [#allocation7], 1

// kernel: spectral_norm_linear.3
$region0: #{spectral_norm_linear.3}
  #allocation0 [shape = 'u32[]', space=smem, size = 0x4, offset = 0x4, fixed_abs, tag = 'smem constant byte address 0x4 - core index']
  #allocation1 [shape = 'u32[144,128]{1,0:T(1,128)}', space=vmem, size = 0x12000, scoped, tag = 'internal scratch']
  #allocation2 [shape = 'f32[1,1]{1,0:T(1,128)S(6)}', space=smem, size = 0x200, scoped, tag = 'scoped memory for spectral_norm_linear.3']
  %s0 = inlined_call_operand.<no memory space> [shape: f32[1,1], index: 0, kind: input, shape index: {}]
  %s1 = inlined_call_operand.vmem [shape: f32[8,128], index: 1, kind: input, shape index: {}]
  %s2 = inlined_call_operand.vmem [shape: f32[128,128], index: 2, kind: input, shape index: {}]
  %s3 = inlined_call_operand.vmem [shape: f32[1,128], index: 3, kind: input, shape index: {}]
  %s4 = inlined_call_operand.hbm [shape: f32[8,128], index: 4, kind: output, shape index: {}]
  %s5 = sld [smem:[#allocation0]]
  $region38: #{spectral_norm_linear.3} parent=0
    _
  %s7 = ssub.s32 1, %s5
  %s8 = scalar_select 0, %s7, %s5
  %9 = sst [smem:[#allocation2]] %s0
  $region1: #{spectral_norm_linear.3} parent=0
    #allocation3 [shape = 'u8[4096]{0}', space=vmem, size = 0x1000, scoped, tag = 'output window, operand 0, single buffered']
    #allocation4 [shape = 's32[1]{0}', space=sflag, size = 0x4, scoped, tag = 'scoped memory for spectral_norm_linear.3']
    %10 = vsyncpa [#allocation4], 0
    // Predicated region
    $region2: #{spectral_norm_linear.3} parent=1 // pred_check
      _
    $region3: #{spectral_norm_linear.3} parent=1 // pred_check_branch
      %12 = sbr.rel (0) target = $region5
    $region4: #{spectral_norm_linear.3} parent=1 // pred_region
      _
    $region5: #{spectral_norm_linear.3} parent=1 // pred_fallthru
      _
    // Predicated region
    $region6: #{spectral_norm_linear.3} parent=1 // pred_check
      _
    $region7: #{spectral_norm_linear.3} parent=1 // pred_check_branch
      %14 = sbr.rel (0) target = $region9
    $region8: #{spectral_norm_linear.3} parent=1 // pred_region
      _
    $region9: #{spectral_norm_linear.3} parent=1 // pred_fallthru
      _
    // Predicated region
    $region10: #{spectral_norm_linear.3} parent=1 // pred_check
      _
    $region11: #{spectral_norm_linear.3} parent=1 // pred_check_branch
      %16 = sbr.rel (0) target = $region13
    $region12: #{spectral_norm_linear.3} parent=1 // pred_region
      _
    $region13: #{spectral_norm_linear.3} parent=1 // pred_fallthru
      _
    // Predicated region
    $region14: #{spectral_norm_linear.3} parent=1 // pred_check
      _
    $region15: #{spectral_norm_linear.3} parent=1 // pred_check_branch
      %18 = sbr.rel (0) target = $region17
    $region16: #{spectral_norm_linear.3} parent=1 // pred_region
      _
    $region17: #{spectral_norm_linear.3} parent=1 // pred_fallthru
      _
    %v19 = vld [vmem:[%s1] sm:$0xff]
    %v20 = vld [vmem:[%s2] sm:$0xff]
    %v21 = vld [vmem:[%s2 + $0x8] sm:$0xff]
    %v22 = vld [vmem:[%s2 + $0x10] sm:$0xff]
    %v23 = vld [vmem:[%s2 + $0x18] sm:$0xff]
    %v24 = vld [vmem:[%s2 + $0x20] sm:$0xff]
    %v25 = vld [vmem:[%s2 + $0x28] sm:$0xff]
    %v26 = vld [vmem:[%s2 + $0x30] sm:$0xff]
    %v27 = vld [vmem:[%s2 + $0x38] sm:$0xff]
    %v28 = vld [vmem:[%s2 + $0x40] sm:$0xff]
    %v29 = vld [vmem:[%s2 + $0x48] sm:$0xff]
    %v30 = vld [vmem:[%s2 + $0x50] sm:$0xff]
    %v31 = vld [vmem:[%s2 + $0x58] sm:$0xff]
    %v32 = vld [vmem:[%s2 + $0x60] sm:$0xff]
    %v33 = vld [vmem:[%s2 + $0x68] sm:$0xff]
    %v34 = vld [vmem:[%s2 + $0x70] sm:$0xff]
    %v35 = vld [vmem:[%s2 + $0x78] sm:$0xff]
    %36 = vmatprep.subr.mxu0 0.0
    %37 = vmatpush1.msra.mxu0 %v35
    %38 = vmatprep.subr.mxu0 0.0
    %39 = vmatpush1.msra.mxu0 %v34
    %40 = vmatprep.subr.mxu0 0.0
    %41 = vmatpush1.msra.mxu0 %v33
    %42 = vmatprep.subr.mxu0 0.0
    %43 = vmatpush1.msra.mxu0 %v32
    %44 = vmatprep.subr.mxu0 0.0
    %45 = vmatpush1.msra.mxu0 %v31
    %46 = vmatprep.subr.mxu0 0.0
    %47 = vmatpush1.msra.mxu0 %v30
    %48 = vmatprep.subr.mxu0 0.0
    %49 = vmatpush1.msra.mxu0 %v29
    %50 = vmatprep.subr.mxu0 0.0
    %51 = vmatpush1.msra.mxu0 %v28
    %52 = vmatprep.subr.mxu0 0.0
    %53 = vmatpush1.msra.mxu0 %v27
    %54 = vmatprep.subr.mxu0 0.0
    %55 = vmatpush1.msra.mxu0 %v26
    %56 = vmatprep.subr.mxu0 0.0
    %57 = vmatpush1.msra.mxu0 %v25
    %58 = vmatprep.subr.mxu0 0.0
    %59 = vmatpush1.msra.mxu0 %v24
    %60 = vmatprep.subr.mxu0 0.0
    %61 = vmatpush1.msra.mxu0 %v23
    %62 = vmatprep.subr.mxu0 0.0
    %63 = vmatpush1.msra.mxu0 %v22
    %64 = vmatprep.subr.mxu0 0.0
    %65 = vmatpush1.msra.mxu0 %v21
    %66 = vmatprep.subr.mxu0 0.0
    %67 = vmatpush1.msra.mxu0 %v20
    %68 = vmatprep.subr.mxu0 0.0
    %69 = vmatpush2.msra.mxu0 0.0
    %70 = vmatprep.subr.mxu0 0.0
    %71 = vmatpush2.msra.mxu0 0.0
    %72 = vmatprep.subr.mxu0 0.0
    %73 = vmatpush2.msra.mxu0 0.0
    %74 = vmatprep.subr.mxu0 0.0
    %75 = vmatpush2.msra.mxu0 0.0
    %76 = vmatprep.subr.mxu0 0.0
    %77 = vmatpush2.msra.mxu0 0.0
    %78 = vmatprep.subr.mxu0 0.0
    %79 = vmatpush2.msra.mxu0 0.0
    %80 = vmatprep.subr.mxu0 0.0
    %81 = vmatpush2.msra.mxu0 0.0
    %82 = vmatprep.subr.mxu0 0.0
    %83 = vmatpush2.msra.mxu0 0.0
    %84 = vmatprep.subr.mxu0 0.0
    %85 = vmatpush2.msra.mxu0 0.0
    %86 = vmatprep.subr.mxu0 0.0
    %87 = vmatpush2.msra.mxu0 0.0
    %88 = vmatprep.subr.mxu0 0.0
    %89 = vmatpush2.msra.mxu0 0.0
    %90 = vmatprep.subr.mxu0 0.0
    %91 = vmatpush2.msra.mxu0 0.0
    %92 = vmatprep.subr.mxu0 0.0
    %93 = vmatpush2.msra.mxu0 0.0
    %94 = vmatprep.subr.mxu0 0.0
    %95 = vmatpush2.msra.mxu0 0.0
    %96 = vmatprep.subr.mxu0 0.0
    %97 = vmatpush2.msra.mxu0 0.0
    %98 = vmatprep.subr.mxu0 0.0
    %99 = vmatpush2.msra.mxu0 0.0
    %100 = vmatprep.mubr.f32.mxu0 0.0
    %101 = vmatmul.mubr.f32.gmra.mxu0 %v19
    %v102 = vpop.f32.mrf.mxu0
    %v103 = vadd.f32 0.0, %v102
    %v104 = vpop.f32.mrf.mxu0
    %105 = vdwg.mxu0
    %p106 = scmp.eq.s32.totalorder 0, 0
    // Predicated region
    $region18: #{spectral_norm_linear.3} parent=1 // pred_check
      %p107 = pneg %p106
    $region19: #{spectral_norm_linear.3} parent=1 // pred_check_branch
      %109 = sbr.rel (%p107) target = $region21
    $region20: #{spectral_norm_linear.3} parent=1 // pred_region
      %110 = vst [vmem:[#allocation3] sm:$0xff] %v103
    $region21: #{spectral_norm_linear.3} parent=1 // pred_fallthru
      _
    %p111 = scmp.gt.s32.totalorder 0, 0
    // Predicated region
    $region22: #{spectral_norm_linear.3} parent=1 // pred_check
      %p112 = pneg %p111
    $region23: #{spectral_norm_linear.3} parent=1 // pred_check_branch
      %114 = sbr.rel (%p112) target = $region25
    $region24: #{spectral_norm_linear.3} parent=1 // pred_region
      %v115 = vld [vmem:[#allocation3] sm:$0xff]
      %v116 = vadd.f32 %v115, %v103
      %117 = vst [vmem:[#allocation3] sm:$0xff] %v116
    $region25: #{spectral_norm_linear.3} parent=1 // pred_fallthru
      _
    // Predicated region
    $region26: #{spectral_norm_linear.3} parent=1 // pred_check
      %p118 = pneg %p106
    $region27: #{spectral_norm_linear.3} parent=1 // pred_check_branch
      %120 = sbr.rel (%p118) target = $region29
    $region28: #{spectral_norm_linear.3} parent=1 // pred_region
      %v121 = vld [vmem:[#allocation3] sm:$0xff]
      %s122 = sld [smem:[#allocation2]]
      %v123 = vstv %s122
      %v124 = vmul.f32 %v121, %v123
      %v125 = vld [vmem:[%s3] sm:$0x1]
      %v127 = vlaneseq
      %v128 = vshrl.u32 %v127, 7
      %v129 = vsub.s32 0, %v128
      %v130 = vrot.slane %v125, %v129
      %v132 = vadd.f32 %v124, %v130
      %133 = vst [vmem:[#allocation3] sm:$0xff] %v132
    $region29: #{spectral_norm_linear.3} parent=1 // pred_fallthru
      _
    // Predicated region
    $region30: #{spectral_norm_linear.3} parent=1 // pred_check
      _
    $region31: #{spectral_norm_linear.3} parent=1 // pred_check_branch
      %135 = sbr.rel (0) target = $region33
    $region32: #{spectral_norm_linear.3} parent=1 // pred_region
      %s137 = ssub.s32 128, 128
      %138 = vsyncadd [#allocation4], %s137
      %s140 = sshll.u32 [#allocation3], 4
      %s141 = int_to_ptr.vmem [resolvable:$true] %s140
      %143 = dma.vmem_to_hbm [thread:$0]  %s141, 128, %s4, [#allocation4]
    $region33: #{spectral_norm_linear.3} parent=1 // pred_fallthru
      _
    // Predicated region
    $region34: #{spectral_norm_linear.3} parent=1 // pred_check
      _
    $region35: #{spectral_norm_linear.3} parent=1 // pred_check_branch
      %145 = sbr.rel (0) target = $region37
    $region36: #{spectral_norm_linear.3} parent=1 // pred_region
      %146 = dma.done [#allocation4], 128
    $region37: #{spectral_norm_linear.3} parent=1 // pred_fallthru
      _
    %147 = vsyncpa [#allocation4], 1

</llo_original>
